<compile_context>
chip_gen: v5e
topology: v5e:2x2
jax: 0.10.0
libtpu: 0.0.40
codegen_flags: <defaults>
</compile_context>

<pallas_src>
import jax
import jax.numpy as jnp
from jax.experimental import pallas as pl
from jax.experimental.pallas import tpu as pltpu


def _softplus_torch(x):
    # torch.nn.functional.softplus with beta=1, threshold=20 (f32 path).
    return jnp.where(x > 20.0, x, jnp.log1p(jnp.exp(x)))


def _action_value_distri_kernel(x_ref, w1_ref, b1_ref, w2_ref, b2_ref,
                                w3_ref, b3_ref, out_ref):
    # Feature-major: x is (in_dim, tb), weights are torch-native (out, in),
    # biases are (out, 1).  Batch columns are independent, so padded lanes of a
    # partial last tile can only contaminate themselves (masked on store).
    h1 = jnp.dot(w1_ref[...], x_ref[...], preferred_element_type=jnp.float32)
    h1 = jnp.maximum(h1 + b1_ref[...], 0.0)

    h2 = jnp.dot(w2_ref[...], h1.astype(jnp.bfloat16),
                 preferred_element_type=jnp.float32)
    h2 = jnp.maximum(h2 + b2_ref[...], 0.0)

    # Output layer: 2 logits per column (row 0 = value_mean, row 1 = value_std).
    logits = jnp.dot(w3_ref[...], h2.astype(jnp.bfloat16),
                     preferred_element_type=jnp.float32) + b3_ref[...]

    row = jax.lax.broadcasted_iota(jnp.int32, logits.shape, dimension=0)
    out_ref[...] = jnp.where(row >= 1, _softplus_torch(logits), logits)


def _round_up(x, m):
    return ((x + m - 1) // m) * m


def _choose_tile_b(B, tile_b):
    """Lane-axis batch tile: multiple of 128 (or full B), >=2 steps for big B."""
    if B <= 128:
        return B                                   # full-extent block
    tb = min(_round_up(min(tile_b, B), 128), _round_up(B, 128))
    if B > 256:
        # Keep >= 2 grid steps so v7x's two TensorCores both get work.
        tb = min(tb, _round_up(-(-B // 2), 128))
    return tb


def action_value_distri_forward(obs, act, params, *, tile_b=8192):
    """Pallas implementation of ActionValueDistri.forward.

    obs: (B, obs_dim), act: (B, act_dim).
    params: (w1, b1, w2, b2, w3, b3) with weights in torch-native (out, in)
            layout and biases shaped (out, 1).
    Returns (B, 2) float32: [value_mean, softplus(value_std)].
    """
    w1, b1, w2, b2, w3, b3 = params
    B, obs_dim = obs.shape
    act_dim = act.shape[-1]
    in_dim = obs_dim + act_dim
    hid1 = w1.shape[0]
    hid2 = w2.shape[0]

    # Wrapper-side merge of obs/act + feature-major transpose, on bf16 rows.
    x = jnp.concatenate([obs, act], axis=-1).astype(jnp.bfloat16).T  # (in_dim, B)

    w1_b = w1.astype(jnp.bfloat16)
    w2_b = w2.astype(jnp.bfloat16)
    w3_b = w3.astype(jnp.bfloat16)
    b1_f = b1.astype(jnp.float32)
    b2_f = b2.astype(jnp.float32)
    b3_f = b3.astype(jnp.float32)

    tb = _choose_tile_b(B, tile_b)
    grid = (pl.cdiv(B, tb),)

    batch_map = lambda i: (0, i)   # tile over the lane (batch) axis
    const_map = lambda i: (0, 0)   # weights/biases stay VMEM-resident

    in_specs = [
        pl.BlockSpec((in_dim, tb), batch_map),
        pl.BlockSpec((hid1, in_dim), const_map),
        pl.BlockSpec((hid1, 1), const_map),
        pl.BlockSpec((hid2, hid1), const_map),
        pl.BlockSpec((hid2, 1), const_map),
        pl.BlockSpec((2, hid2), const_map),
        pl.BlockSpec((2, 1), const_map),
    ]
    out_specs = pl.BlockSpec((2, tb), batch_map)

    flops = 2 * B * (in_dim * hid1 + hid1 * hid2 + hid2 * 2)
    bytes_accessed = (
        B * in_dim * 2                                   # bf16 activations in
        + (hid1 * in_dim + hid2 * hid1 + 2 * hid2) * 2   # bf16 weights
        + (hid1 + hid2 + 2) * 4                          # f32 biases
        + B * 2 * 4                                      # f32 output
    )
    cost = pl.CostEstimate(flops=flops, transcendentals=2 * B,
                           bytes_accessed=bytes_accessed)

    out_fm = pl.pallas_call(
        _action_value_distri_kernel,
        out_shape=jax.ShapeDtypeStruct((2, B), jnp.float32),
        grid=grid,
        in_specs=in_specs,
        out_specs=out_specs,
        compiler_params=pltpu.CompilerParams(
            # Batch columns are independent -> shard the grid across TensorCores.
            dimension_semantics=("parallel",),
        ),
        cost_estimate=cost,
    )(x, w1_b, b1_f, w2_b, b2_f, w3_b, b3_f)

    return out_fm.T   # (B, 2): [value_mean, softplus(value_std)]


def _reference_forward(obs, act, params):
    """Pure-JAX reference mirroring the kernel numerics (bf16 ops, f32 accum)."""
    w1, b1, w2, b2, w3, b3 = params
    x = jnp.concatenate([obs, act], axis=-1).astype(jnp.bfloat16).T
    h1 = jnp.dot(w1.astype(jnp.bfloat16), x, preferred_element_type=jnp.float32)
    h1 = jnp.maximum(h1 + b1, 0.0)
    h2 = jnp.dot(w2.astype(jnp.bfloat16), h1.astype(jnp.bfloat16),
                 preferred_element_type=jnp.float32)
    h2 = jnp.maximum(h2 + b2, 0.0)
    logits = jnp.dot(w3.astype(jnp.bfloat16), h2.astype(jnp.bfloat16),
                     preferred_element_type=jnp.float32) + b3
    mean, std = logits[:1], logits[1:]
    return jnp.concatenate([mean, _softplus_torch(std)], axis=0).T


def make_params(key, obs_dim, act_dim, hidden_sizes):
    """Deterministic synthetic parameters for mlp([obs+act] + hidden + [2]).

    Weights stored torch-native (out_features, in_features); biases (out, 1).
    """
    sizes = [obs_dim + act_dim] + list(hidden_sizes) + [2]
    params = []
    for j in range(len(sizes) - 1):
        key, kw = jax.random.split(key)
        fan_in, fan_out = sizes[j], sizes[j + 1]
        w = (jax.random.normal(kw, (fan_out, fan_in), jnp.float32)
             * (1.0 / jnp.sqrt(jnp.float32(fan_in))))
        b = jnp.full((fan_out, 1), 0.01 * (j + 1), jnp.float32)
        params += [w, b]
    return tuple(params)


if __name__ == "__main__":
    # Small shapes consistent with the module: obs_dim=24, act_dim=8, hidden=(32, 32).
    B, obs_dim, act_dim = 2, 24, 8
    hidden_sizes = (32, 32)

    key = jax.random.PRNGKey(0)
    k_obs, k_act, k_par, k_big = jax.random.split(key, 4)
    obs = jax.random.normal(k_obs, (B, obs_dim), jnp.float32)
    act = jax.random.normal(k_act, (B, act_dim), jnp.float32)
    params = make_params(k_par, obs_dim, act_dim, hidden_sizes)

    out = jax.block_until_ready(action_value_distri_forward(obs, act, params))
    ref = _reference_forward(obs, act, params)
    assert out.shape == (B, 2), out.shape
    assert jnp.allclose(out, ref, atol=1e-3, rtol=1e-3), (out, ref)

    # Exercise the multi-step, pipelined path with a masked last lane-tile:
    # B=1000 -> tb=512, grid=2 (weights stay VMEM-resident across steps).
    Bb = 1000
    kb1, kb2 = jax.random.split(k_big)
    obs_big = jax.random.normal(kb1, (Bb, obs_dim), jnp.float32)
    act_big = jax.random.normal(kb2, (Bb, act_dim), jnp.float32)
    out_big = jax.block_until_ready(
        action_value_distri_forward(obs_big, act_big, params))
    ref_big = _reference_forward(obs_big, act_big, params)
    assert out_big.shape == (Bb, 2), out_big.shape
    assert jnp.allclose(out_big, ref_big, atol=1e-3, rtol=1e-3)

    print("KERNEL_OK")
</pallas_src>

<mosaic_0001>
module attributes {stable_mosaic.version = 11 : i64} {
  func.func @_action_value_distri_kernel(%arg0: i32, %arg1: memref<32x2xbf16, #tpu.memory_space<vmem>>, %arg2: memref<32x32xbf16, #tpu.memory_space<vmem>>, %arg3: memref<32x1xf32, #tpu.memory_space<vmem>>, %arg4: memref<32x32xbf16, #tpu.memory_space<vmem>>, %arg5: memref<32x1xf32, #tpu.memory_space<vmem>>, %arg6: memref<2x32xbf16, #tpu.memory_space<vmem>>, %arg7: memref<2x1xf32, #tpu.memory_space<vmem>>, %arg8: memref<2x2xf32, #tpu.memory_space<vmem>>) attributes {dimension_semantics = [#tpu.dimension_semantics<parallel>], iteration_bounds = array<i64: 1>, scalar_prefetch = 0 : i64, scratch_operands = 0 : i64, tpu.core_type = #tpu.core_type<tc>, window_params = [{transform_indices = @transform_0, window_bounds = array<i64: 32, 2>}, {pipeline_mode = #tpu.pipeline_mode<synchronous>, transform_indices = @transform_1, window_bounds = array<i64: 32, 32>}, {pipeline_mode = #tpu.pipeline_mode<synchronous>, transform_indices = @transform_2, window_bounds = array<i64: 32, 1>}, {pipeline_mode = #tpu.pipeline_mode<synchronous>, transform_indices = @transform_3, window_bounds = array<i64: 32, 32>}, {pipeline_mode = #tpu.pipeline_mode<synchronous>, transform_indices = @transform_4, window_bounds = array<i64: 32, 1>}, {pipeline_mode = #tpu.pipeline_mode<synchronous>, transform_indices = @transform_5, window_bounds = array<i64: 2, 32>}, {pipeline_mode = #tpu.pipeline_mode<synchronous>, transform_indices = @transform_6, window_bounds = array<i64: 2, 1>}, {transform_indices = @transform_7, window_bounds = array<i64: 2, 2>}]} {
    %c0 = arith.constant 0 : index
    %c0_0 = arith.constant 0 : index
    %0 = vector.load %arg2[%c0, %c0_0] : memref<32x32xbf16, #tpu.memory_space<vmem>>, vector<32x32xbf16>
    %c0_1 = arith.constant 0 : index
    %c0_2 = arith.constant 0 : index
    %1 = vector.load %arg1[%c0_1, %c0_2] : memref<32x2xbf16, #tpu.memory_space<vmem>>, vector<32x2xbf16>
    %cst = arith.constant dense<0.000000e+00> : vector<32x2xf32>
    %2 = tpu.matmul %0, %1, %cst {dimension_numbers = #tpu.dot_dimension_numbers<[1], [0], [0], [1], [0, 0, 1, 1], [], []>} : vector<32x32xbf16>, vector<32x2xbf16>, vector<32x2xf32> -> vector<32x2xf32>
    %c0_3 = arith.constant 0 : index
    %c0_4 = arith.constant 0 : index
    %3 = vector.load %arg3[%c0_3, %c0_4] : memref<32x1xf32, #tpu.memory_space<vmem>>, vector<32x1xf32>
    %4 = vector.broadcast %3 : vector<32x1xf32> to vector<32x2xf32>
    %5 = arith.addf %2, %4 : vector<32x2xf32>
    %cst_5 = arith.constant 0.000000e+00 : f32
    %6 = vector.broadcast %cst_5 : f32 to vector<32x2xf32>
    %7 = arith.maximumf %5, %6 : vector<32x2xf32>
    %c0_6 = arith.constant 0 : index
    %c0_7 = arith.constant 0 : index
    %8 = vector.load %arg4[%c0_6, %c0_7] : memref<32x32xbf16, #tpu.memory_space<vmem>>, vector<32x32xbf16>
    %9 = arith.truncf %7 : vector<32x2xf32> to vector<32x2xbf16>
    %cst_8 = arith.constant dense<0.000000e+00> : vector<32x2xf32>
    %10 = tpu.matmul %8, %9, %cst_8 {dimension_numbers = #tpu.dot_dimension_numbers<[1], [0], [0], [1], [0, 0, 1, 1], [], []>} : vector<32x32xbf16>, vector<32x2xbf16>, vector<32x2xf32> -> vector<32x2xf32>
    %c0_9 = arith.constant 0 : index
    %c0_10 = arith.constant 0 : index
    %11 = vector.load %arg5[%c0_9, %c0_10] : memref<32x1xf32, #tpu.memory_space<vmem>>, vector<32x1xf32>
    %12 = vector.broadcast %11 : vector<32x1xf32> to vector<32x2xf32>
    %13 = arith.addf %10, %12 : vector<32x2xf32>
    %cst_11 = arith.constant 0.000000e+00 : f32
    %14 = vector.broadcast %cst_11 : f32 to vector<32x2xf32>
    %15 = arith.maximumf %13, %14 : vector<32x2xf32>
    %c0_12 = arith.constant 0 : index
    %c0_13 = arith.constant 0 : index
    %16 = vector.load %arg6[%c0_12, %c0_13] : memref<2x32xbf16, #tpu.memory_space<vmem>>, vector<2x32xbf16>
    %17 = arith.truncf %15 : vector<32x2xf32> to vector<32x2xbf16>
    %cst_14 = arith.constant dense<0.000000e+00> : vector<2x2xf32>
    %18 = tpu.matmul %16, %17, %cst_14 {dimension_numbers = #tpu.dot_dimension_numbers<[1], [0], [0], [1], [0, 0, 1, 1], [], []>} : vector<2x32xbf16>, vector<32x2xbf16>, vector<2x2xf32> -> vector<2x2xf32>
    %c0_15 = arith.constant 0 : index
    %c0_16 = arith.constant 0 : index
    %19 = vector.load %arg7[%c0_15, %c0_16] : memref<2x1xf32, #tpu.memory_space<vmem>>, vector<2x1xf32>
    %20 = vector.broadcast %19 : vector<2x1xf32> to vector<2x2xf32>
    %21 = arith.addf %18, %20 : vector<2x2xf32>
    %22 = tpu.iota {dimensions = array<i32: 0>} : vector<2x2xi32>
    %c1_i32 = arith.constant 1 : i32
    %23 = vector.broadcast %c1_i32 : i32 to vector<2x2xi32>
    %24 = arith.cmpi sge, %22, %23 : vector<2x2xi32>
    %cst_17 = arith.constant 2.000000e+01 : f32
    %25 = vector.broadcast %cst_17 : f32 to vector<2x2xf32>
    %26 = arith.cmpf ogt, %21, %25 : vector<2x2xf32>
    %27 = math.exp %21 : vector<2x2xf32>
    %28 = math.log1p %27 : vector<2x2xf32>
    %29 = arith.select %26, %21, %28 : vector<2x2xi1>, vector<2x2xf32>
    %30 = arith.select %24, %29, %21 : vector<2x2xi1>, vector<2x2xf32>
    %c0_18 = arith.constant 0 : index
    %c0_19 = arith.constant 0 : index
    %31 = vector.load %arg8[%c0_18, %c0_19] : memref<2x2xf32, #tpu.memory_space<vmem>>, vector<2x2xf32>
    tpu.vector_store %arg8[%c0_18, %c0_19], %30 {strides = array<i32>} : memref<2x2xf32, #tpu.memory_space<vmem>>, vector<2x2xf32>,
    return
  }
  func.func @transform_0(%arg0: i32) -> (i32, i32) {
    %c0_i32 = arith.constant 0 : i32
    %c0_i32_0 = arith.constant 0 : i32
    return %c0_i32, %arg0 : i32, i32
  }
  func.func @transform_1(%arg0: i32) -> (i32, i32) {
    %c0_i32 = arith.constant 0 : i32
    %c0_i32_0 = arith.constant 0 : i32
    %c0_i32_1 = arith.constant 0 : i32
    return %c0_i32, %c0_i32_0 : i32, i32
  }
  func.func @transform_2(%arg0: i32) -> (i32, i32) {
    %c0_i32 = arith.constant 0 : i32
    %c0_i32_0 = arith.constant 0 : i32
    %c0_i32_1 = arith.constant 0 : i32
    return %c0_i32, %c0_i32_0 : i32, i32
  }
  func.func @transform_3(%arg0: i32) -> (i32, i32) {
    %c0_i32 = arith.constant 0 : i32
    %c0_i32_0 = arith.constant 0 : i32
    %c0_i32_1 = arith.constant 0 : i32
    return %c0_i32, %c0_i32_0 : i32, i32
  }
  func.func @transform_4(%arg0: i32) -> (i32, i32) {
    %c0_i32 = arith.constant 0 : i32
    %c0_i32_0 = arith.constant 0 : i32
    %c0_i32_1 = arith.constant 0 : i32
    return %c0_i32, %c0_i32_0 : i32, i32
  }
  func.func @transform_5(%arg0: i32) -> (i32, i32) {
    %c0_i32 = arith.constant 0 : i32
    %c0_i32_0 = arith.constant 0 : i32
    %c0_i32_1 = arith.constant 0 : i32
    return %c0_i32, %c0_i32_0 : i32, i32
  }
  func.func @transform_6(%arg0: i32) -> (i32, i32) {
    %c0_i32 = arith.constant 0 : i32
    %c0_i32_0 = arith.constant 0 : i32
    %c0_i32_1 = arith.constant 0 : i32
    return %c0_i32, %c0_i32_0 : i32, i32
  }
  func.func @transform_7(%arg0: i32) -> (i32, i32) {
    %c0_i32 = arith.constant 0 : i32
    %c0_i32_0 = arith.constant 0 : i32
    return %c0_i32, %arg0 : i32, i32
  }
}

</mosaic_0001>

<llo_original>
// kernel: tpu_custom_call.1
$region0: #{tpu_custom_call.1}
  #allocation0 [shape = 'u32[]', space=smem, size = 0x4, offset = 0x4, fixed_abs, tag = 'smem constant byte address 0x4 - core index']
  #allocation1 [shape = 'u32[72,128]{1,0:T(1,128)}', space=vmem, size = 0x9000, scoped, tag = 'internal scratch']
  %s0 = inlined_call_operand.vmem [shape: bf16[32,2], index: 0, kind: input, shape index: {}]
  %s1 = inlined_call_operand.vmem [shape: bf16[32,32], index: 1, kind: input, shape index: {}]
  %s2 = inlined_call_operand.vmem [shape: f32[32,1], index: 2, kind: input, shape index: {}]
  %s3 = inlined_call_operand.vmem [shape: bf16[32,32], index: 3, kind: input, shape index: {}]
  %s4 = inlined_call_operand.vmem [shape: f32[32,1], index: 4, kind: input, shape index: {}]
  %s5 = inlined_call_operand.vmem [shape: bf16[2,32], index: 5, kind: input, shape index: {}]
  %s6 = inlined_call_operand.vmem [shape: f32[2,1], index: 6, kind: input, shape index: {}]
  %s7 = inlined_call_operand.hbm [shape: f32[2,2], index: 7, kind: output, shape index: {}]
  %s8 = sld [smem:[#allocation0]]
  $region38: #{tpu_custom_call.1} parent=0
    _
  %s10 = ssub.s32 1, %s8
  %s11 = scalar_select 0, %s10, %s8
  $region1: #{tpu_custom_call.1} parent=0
    #allocation2 [shape = 'u8[1024]{0}', space=vmem, size = 0x400, scoped, tag = 'output window, operand 0, single buffered']
    #allocation3 [shape = 's32[1]{0}', space=sflag, size = 0x4, scoped, tag = 'scoped memory for tpu_custom_call.1']
    %12 = vsyncpa [#allocation3], 0
    // Predicated region
    $region2: #{tpu_custom_call.1} parent=1 // pred_check
      _
    $region3: #{tpu_custom_call.1} parent=1 // pred_check_branch
      %14 = sbr.rel (0) target = $region5
    $region4: #{tpu_custom_call.1} parent=1 // pred_region
      _
    $region5: #{tpu_custom_call.1} parent=1 // pred_fallthru
      _
    // Predicated region
    $region6: #{tpu_custom_call.1} parent=1 // pred_check
      _
    $region7: #{tpu_custom_call.1} parent=1 // pred_check_branch
      %16 = sbr.rel (0) target = $region9
    $region8: #{tpu_custom_call.1} parent=1 // pred_region
      _
    $region9: #{tpu_custom_call.1} parent=1 // pred_fallthru
      _
    // Predicated region
    $region10: #{tpu_custom_call.1} parent=1 // pred_check
      _
    $region11: #{tpu_custom_call.1} parent=1 // pred_check_branch
      %18 = sbr.rel (0) target = $region13
    $region12: #{tpu_custom_call.1} parent=1 // pred_region
      _
    $region13: #{tpu_custom_call.1} parent=1 // pred_fallthru
      _
    // Predicated region
    $region14: #{tpu_custom_call.1} parent=1 // pred_check
      _
    $region15: #{tpu_custom_call.1} parent=1 // pred_check_branch
      %20 = sbr.rel (0) target = $region17
    $region16: #{tpu_custom_call.1} parent=1 // pred_region
      _
    $region17: #{tpu_custom_call.1} parent=1 // pred_fallthru
      _
    // Predicated region
    $region18: #{tpu_custom_call.1} parent=1 // pred_check
      _
    $region19: #{tpu_custom_call.1} parent=1 // pred_check_branch
      %22 = sbr.rel (0) target = $region21
    $region20: #{tpu_custom_call.1} parent=1 // pred_region
      _
    $region21: #{tpu_custom_call.1} parent=1 // pred_fallthru
      _
    // Predicated region
    $region22: #{tpu_custom_call.1} parent=1 // pred_check
      _
    $region23: #{tpu_custom_call.1} parent=1 // pred_check_branch
      %24 = sbr.rel (0) target = $region25
    $region24: #{tpu_custom_call.1} parent=1 // pred_region
      _
    $region25: #{tpu_custom_call.1} parent=1 // pred_fallthru
      _
    // Predicated region
    $region26: #{tpu_custom_call.1} parent=1 // pred_check
      _
    $region27: #{tpu_custom_call.1} parent=1 // pred_check_branch
      %26 = sbr.rel (0) target = $region29
    $region28: #{tpu_custom_call.1} parent=1 // pred_region
      _
    $region29: #{tpu_custom_call.1} parent=1 // pred_fallthru
      _
    %v28 = vld [vmem:[%s1] sm:$0xf]
    %v29 = vld [vmem:[%s1 + $0x4] sm:$0xf]
    %v30 = vld [vmem:[%s1 + $0x8] sm:$0xf]
    %v31 = vld [vmem:[%s1 + $0xc] sm:$0xf]
    %v32 = vld [vmem:[%s0] sm:$0xf]
    %v33 = vld [vmem:[%s0 + $0x4] sm:$0xf]
    %v34 = vld [vmem:[%s0 + $0x8] sm:$0xf]
    %v35 = vld [vmem:[%s0 + $0xc] sm:$0xf]
    %v36 = vld [vmem:[%s2] sm:$0xff]
    %v37 = vld [vmem:[%s2 + $0x8] sm:$0xff]
    %v38 = vld [vmem:[%s2 + $0x10] sm:$0xff]
    %v39 = vld [vmem:[%s2 + $0x18] sm:$0xff]
    %41 = vset.pattern.permute.xlu0 0
    %42 = vperm.xlu0 %41, %v36
    %v43 = vpop.permute.xlu0 %42
    %46 = vset.pattern.permute.xlu0 0
    %47 = vperm.xlu0 %46, %v37
    %v48 = vpop.permute.xlu0 %47
    %51 = vset.pattern.permute.xlu0 0
    %52 = vperm.xlu0 %51, %v38
    %v53 = vpop.permute.xlu0 %52
    %56 = vset.pattern.permute.xlu0 0
    %57 = vperm.xlu0 %56, %v39
    %v58 = vpop.permute.xlu0 %57
    %v64 = vunpack.c.l.b16 %v28
    %v65 = vunpack.c.l.b16 %v29
    %v66 = vunpack.c.l.b16 %v30
    %v67 = vunpack.c.l.b16 %v31
    %v68 = vpack.c.b16 %v65, %v64
    %v69 = vpack.c.b16 %v67, %v66
    %v74 = vunpack.c.l.b16 %v32
    %v75 = vunpack.c.l.b16 %v33
    %v76 = vunpack.c.l.b16 %v34
    %v77 = vunpack.c.l.b16 %v35
    %v78 = vpack.c.b16 %v75, %v74
    %v79 = vpack.c.b16 %v77, %v76
    %vm82 = vcmask 261120
    %v84 = vsel %vm82, %v68, 0
    %v87 = vsel %vm82, %v69, 0
    %89 = vmatpush.bf16.msra.mxu0 0
    %90 = vmatpush.bf16.msra.mxu0 0
    %91 = vmatpush.bf16.msra.mxu0 0
    %92 = vmatpush.bf16.msra.mxu0 0
    %93 = vmatpush.bf16.msra.mxu0 0
    %94 = vmatpush.bf16.msra.mxu0 0
    %95 = vmatpush.bf16.msra.mxu0 %v79
    %96 = vmatpush.bf16.msra.mxu0 %v78
    %97 = vmatmul.bf16.gmra.mxu0 %v84
    %v98 = vpop.f32.mrf.mxu0
    %v99 = vadd.f32 %v43, %v98
    %v100 = vpop.f32.mrf.mxu0
    %v101 = vadd.f32 %v48, %v100
    %102 = vmatmul.bf16.gmra.mxu0 %v87
    %v103 = vpop.f32.mrf.mxu0
    %v104 = vadd.f32 %v53, %v103
    %v105 = vpop.f32.mrf.mxu0
    %v106 = vadd.f32 %v58, %v105
    %107 = vdwg.mxu0
    %v108 = vmax.f32 %v99, 0.0
    %v109 = vmax.f32 %v101, 0.0
    %v110 = vmax.f32 %v104, 0.0
    %v111 = vmax.f32 %v106, 0.0
    %v112 = vld [vmem:[%s3] sm:$0xf]
    %v113 = vld [vmem:[%s3 + $0x4] sm:$0xf]
    %v114 = vld [vmem:[%s3 + $0x8] sm:$0xf]
    %v115 = vld [vmem:[%s3 + $0xc] sm:$0xf]
    %v116 = vpack.c.bf16 %v109, %v108
    %v117 = vpack.c.bf16 %v111, %v110
    %v118 = vld [vmem:[%s4] sm:$0xff]
    %v119 = vld [vmem:[%s4 + $0x8] sm:$0xff]
    %v120 = vld [vmem:[%s4 + $0x10] sm:$0xff]
    %v121 = vld [vmem:[%s4 + $0x18] sm:$0xff]
    %123 = vset.pattern.permute.xlu0 0
    %124 = vperm.xlu0 %123, %v118
    %v125 = vpop.permute.xlu0 %124
    %128 = vset.pattern.permute.xlu0 0
    %129 = vperm.xlu0 %128, %v119
    %v130 = vpop.permute.xlu0 %129
    %133 = vset.pattern.permute.xlu0 0
    %134 = vperm.xlu0 %133, %v120
    %v135 = vpop.permute.xlu0 %134
    %138 = vset.pattern.permute.xlu0 0
    %139 = vperm.xlu0 %138, %v121
    %v140 = vpop.permute.xlu0 %139
    %v146 = vunpack.c.l.b16 %v112
    %v147 = vunpack.c.l.b16 %v113
    %v148 = vunpack.c.l.b16 %v114
    %v149 = vunpack.c.l.b16 %v115
    %v150 = vpack.c.b16 %v147, %v146
    %v151 = vpack.c.b16 %v149, %v148
    %v153 = vsel %vm82, %v150, 0
    %v156 = vsel %vm82, %v151, 0
    %158 = vmatpush.bf16.msra.mxu0 0
    %159 = vmatpush.bf16.msra.mxu0 0
    %160 = vmatpush.bf16.msra.mxu0 0
    %161 = vmatpush.bf16.msra.mxu0 0
    %162 = vmatpush.bf16.msra.mxu0 0
    %163 = vmatpush.bf16.msra.mxu0 0
    %164 = vmatpush.bf16.msra.mxu0 %v117
    %165 = vmatpush.bf16.msra.mxu0 %v116
    %166 = vmatmul.bf16.gmra.mxu0 %v153
    %v167 = vpop.f32.mrf.mxu0
    %v168 = vadd.f32 %v125, %v167
    %v169 = vpop.f32.mrf.mxu0
    %v170 = vadd.f32 %v130, %v169
    %171 = vmatmul.bf16.gmra.mxu0 %v156
    %v172 = vpop.f32.mrf.mxu0
    %v173 = vadd.f32 %v135, %v172
    %v174 = vpop.f32.mrf.mxu0
    %v175 = vadd.f32 %v140, %v174
    %176 = vdwg.mxu0
    %v177 = vmax.f32 %v168, 0.0
    %v178 = vmax.f32 %v170, 0.0
    %v179 = vmax.f32 %v173, 0.0
    %v180 = vmax.f32 %v175, 0.0
    %v181 = vld [vmem:[%s5] sm:$0x1]
    %v182 = vpack.c.bf16 %v178, %v177
    %v183 = vpack.c.bf16 %v180, %v179
    %v184 = vld [vmem:[%s6] sm:$0x3]
    %186 = vset.pattern.permute.xlu0 0
    %187 = vperm.xlu0 %186, %v184
    %v188 = vpop.permute.xlu0 %187
    %v191 = vsel %vm82, %v181, 0
    %193 = vmatpush.bf16.msra.mxu0 0
    %194 = vmatpush.bf16.msra.mxu0 0
    %195 = vmatpush.bf16.msra.mxu0 0
    %196 = vmatpush.bf16.msra.mxu0 0
    %197 = vmatpush.bf16.msra.mxu0 0
    %198 = vmatpush.bf16.msra.mxu0 0
    %199 = vmatpush.bf16.msra.mxu0 %v183
    %200 = vmatpush.bf16.msra.mxu0 %v182
    %201 = vmatmul.bf16.gmra.mxu0 %v191
    %v202 = vpop.f32.mrf.mxu0
    %v203 = vadd.f32 %v188, %v202
    %v204 = vpop.f32.mrf.mxu0
    %205 = vdwg.mxu0
    %v206 = vlaneseq
    %v207 = vshrl.u32 %v206, 7
    %vm208 = vcmp.ge.s32.totalorder %v207, 1
    %vm209 = vcmp.gt.f32.partialorder %v203, 20.0
    %v210 = vmul.f32 %v203, 1.442695
    %v211 = vpow.pop %v210
    %v212 = vadd.f32 %v211, 1.0
    %v213 = vlog2.pop %v212
    %v214 = vmul.f32 %v213, 0.6931472
    %v215 = vmul.f32 -0.5, %v211
    %v216 = vadd.f32 %v215, 1.0
    %v217 = vmul.f32 %v216, %v211
    %v218 = vand.u32 2147483647, %v211
    %vm219 = vcmp.lt.f32.partialorder %v218, 0.0004427343
    %v220 = vsel %vm219, %v217, %v214
    %v221 = vsel %vm209, %v203, %v220
    %v222 = vsel %vm208, %v221, %v203
    %vm223 = vcmask 9216
    %224 = vst.msk [vmem:[#allocation2] sm:$0x3] %vm223, %v222
    // Predicated region
    $region30: #{tpu_custom_call.1} parent=1 // pred_check
      _
    $region31: #{tpu_custom_call.1} parent=1 // pred_check_branch
      %226 = sbr.rel (0) target = $region33
    $region32: #{tpu_custom_call.1} parent=1 // pred_region
      %228 = vsyncadd [#allocation3], 0
      %s230 = sshll.u32 [#allocation2], 4
      %s231 = int_to_ptr.vmem [resolvable:$true] %s230
      %s232 = sshll.u32 %s7, 4
      %s233 = int_to_ptr.hbm [resolvable:$true] %s232
      %235 = dma.vmem_to_hbm [thread:$0]  %s231, 32, %s233, [#allocation3]
    $region33: #{tpu_custom_call.1} parent=1 // pred_fallthru
      _
    // Predicated region
    $region34: #{tpu_custom_call.1} parent=1 // pred_check
      _
    $region35: #{tpu_custom_call.1} parent=1 // pred_check_branch
      %237 = sbr.rel (0) target = $region37
    $region36: #{tpu_custom_call.1} parent=1 // pred_region
      %239 = dma.done [#allocation3], 32
    $region37: #{tpu_custom_call.1} parent=1 // pred_fallthru
      _
    %240 = vsyncpa [#allocation3], 1

</llo_original>
